<compile_context>
chip_gen: v6e
topology: v6e:2x2x1
jax: 0.10.0
libtpu: 0.0.40
codegen_flags: <defaults>
</compile_context>

<pallas_src>
import functools

import jax
import jax.numpy as jnp
from jax.experimental import pallas as pl
from jax.experimental.pallas import tpu as pltpu

_LANES = 128


def _mean_pool_single_kernel(x_ref, o_ref, *, inv_s):
    # Whole reduction axis is resident: sum in f32 (accumulation dtype, no
    # whole-tile upcast temporary), scale once, store a lane-dense output.
    o_ref[...] = (jnp.sum(x_ref[...], axis=1, dtype=jnp.float32) * inv_s).astype(o_ref.dtype)


def _mean_pool_multi_kernel(x_ref, o_ref, acc_ref, *, inv_s):
    s = pl.program_id(1)

    @pl.when(s == 0)
    def _init():
        acc_ref[...] = jnp.zeros_like(acc_ref)

    # Partial sum over this S-tile, accumulated in f32.
    acc_ref[...] += jnp.sum(x_ref[...], axis=1, dtype=jnp.float32)

    @pl.when(s == pl.num_programs(1) - 1)
    def _finalize():
        o_ref[...] = (acc_ref[...] * inv_s).astype(o_ref.dtype)


def _divisors(n):
    small, large = [], []
    i = 1
    while i * i <= n:
        if n % i == 0:
            small.append(i)
            if i != n // i:
                large.append(n // i)
        i += 1
    return small + large[::-1]  # ascending


def _vmem_params():
    """Returns (per-input-tile budget, scoped-vmem cap, prefer >=2 B-grid steps)."""
    capacity = 128 * 1024 * 1024
    try:
        capacity = int(pltpu.get_tpu_info().vmem_capacity_bytes)
    except Exception:
        pass
    if capacity <= 64 * 1024 * 1024:
        # v7x-like: 64 MiB VMEM per TC, 2 TensorCores share HBM -> smaller
        # tiles, leave compiler headroom, keep the parallel B axis splittable.
        return 6 * 1024 * 1024, 48 * 1024 * 1024, True
    # v5e / v6e: 128 MiB VMEM, single TensorCore -> big tiles, ~96 MiB cap.
    return 20 * 1024 * 1024, 96 * 1024 * 1024, False


def _pick_tiles(B, S, D, in_itemsize, out_itemsize, budget_bytes, prefer_split_b):
    """Pick (TB, TS): maximize TS first (full-S preferred), then TB.

    TS must be full-S or a multiple of the input sublane packing factor.
    TB must be full-B or a multiple of the *output* sublane factor (it is the
    second-to-last dim of the (TB, D) output block).  D stays full extent.
    """
    sub_in = {4: 8, 2: 16, 1: 32}.get(in_itemsize, 8)
    sub_out = {4: 8, 2: 16, 1: 32}.get(out_itemsize, 8)

    ts_cands = sorted({t for t in _divisors(S) if t == S or t % sub_in == 0},
                      reverse=True)
    tb_all = [d for d in _divisors(B) if d == B or d % sub_out == 0]
    if prefer_split_b:
        split = [d for d in tb_all if B // d >= 2]
        if split:  # soft preference: only when a legal split exists
            tb_all = split
    tb_cands = sorted(tb_all, reverse=True)

    row_bytes = D * in_itemsize
    for ts in ts_cands:          # biggest TS first (full-S preferred)
        for tb in tb_cands:      # then biggest TB that fits the budget
            if tb * ts * row_bytes <= budget_bytes:
                return tb, ts
    return min(tb_cands), min(ts_cands)  # fallback: smallest legal tile


def mean_pool(x: jax.Array, *, tb=None, ts=None):
    """Pallas equivalent of MeanPool.forward: returns (x.mean(axis=1), None).

    Optional tb/ts override the auto-picked batch/sequence tile sizes and
    refer to the kernel-internal layout (small-D lane packing is disabled
    when either is given).
    """
    B, S, D = x.shape
    in_itemsize = jnp.dtype(x.dtype).itemsize
    budget, vmem_cap, prefer_split_b = _vmem_params()
    auto = tb is None and ts is None

    # Small-D lane packing: fold r consecutive sequence steps into the lane
    # axis so every vreg / DMA / output store is lane-dense.  This is a
    # contiguous (metadata-only) reshape; the r partial means are folded back
    # down to (B, D) in the wrapper afterwards.
    r = 1
    if auto and D < _LANES and _LANES % D == 0:
        r = _LANES // D
        while r > 1 and S % r != 0:
            r //= 2
    xk = x.reshape(B, S // r, r * D) if r > 1 else x
    Bk, Sk, Dk = xk.shape
    out_dtype = jnp.float32 if r > 1 else x.dtype
    out_itemsize = jnp.dtype(out_dtype).itemsize

    a_tb, a_ts = _pick_tiles(Bk, Sk, Dk, in_itemsize, out_itemsize,
                             budget, prefer_split_b)
    TB = a_tb if tb is None else tb
    TS = a_ts if ts is None else ts
    assert Bk % TB == 0 and Sk % TS == 0, (Bk, Sk, TB, TS)
    gb, gs = Bk // TB, Sk // TS

    # Scoped-VMEM accounting: double-buffered input + output tiles, the f32
    # accumulator (multi-step only), plus a whole-tile f32 upcast temporary
    # for sub-32-bit inputs (conservative; the reduce uses dtype=f32).
    in_tile = TB * TS * Dk * in_itemsize
    out_tile = TB * Dk * out_itemsize
    acc_tile = TB * Dk * 4 if gs > 1 else 0
    upcast_tile = TB * TS * Dk * 4 if in_itemsize < 4 else 0
    needed = 2 * in_tile + 2 * out_tile + acc_tile + upcast_tile
    vmem_limit = min(max(2 * needed, 16 * 1024 * 1024), vmem_cap)
    vmem_limit = int(max(vmem_limit, needed + (2 << 20)))  # never under-provision

    inv_s = 1.0 / S  # scale by the ORIGINAL sequence length
    cost = pl.CostEstimate(
        flops=B * S * D,  # adds for the reduction
        transcendentals=0,
        bytes_accessed=B * S * D * in_itemsize + Bk * Dk * out_itemsize,
    )

    if gs == 1:
        # Whole S resident per grid step: no accumulator scratch needed.
        out = pl.pallas_call(
            functools.partial(_mean_pool_single_kernel, inv_s=inv_s),
            out_shape=jax.ShapeDtypeStruct((Bk, Dk), out_dtype),
            grid=(gb,),
            in_specs=[pl.BlockSpec((TB, Sk, Dk), lambda b: (b, 0, 0))],
            out_specs=pl.BlockSpec((TB, Dk), lambda b: (b, 0)),
            compiler_params=pltpu.CompilerParams(
                dimension_semantics=("parallel",),
                vmem_limit_bytes=vmem_limit,
            ),
            cost_estimate=cost,
        )(xk)
    else:
        out = pl.pallas_call(
            functools.partial(_mean_pool_multi_kernel, inv_s=inv_s),
            out_shape=jax.ShapeDtypeStruct((Bk, Dk), out_dtype),
            grid=(gb, gs),  # reduction axis (S) last
            in_specs=[pl.BlockSpec((TB, TS, Dk), lambda b, s: (b, s, 0))],
            out_specs=pl.BlockSpec((TB, Dk), lambda b, s: (b, 0)),
            scratch_shapes=[pltpu.VMEM((TB, Dk), jnp.float32)],
            compiler_params=pltpu.CompilerParams(
                dimension_semantics=("parallel", "arbitrary"),
                vmem_limit_bytes=vmem_limit,
            ),
            cost_estimate=cost,
        )(xk)

    if r > 1:
        # Fold the r lane-packed partial means back to (B, D) in f32.
        out = out.reshape(B, r, D).sum(axis=1).astype(x.dtype)
    return out, None


if __name__ == "__main__":
    key = jax.random.PRNGKey(0)
    k0, k1, k2 = jax.random.split(key, 3)

    # 1) Small MAE-like shape, automatic tiling.  D=32 exercises the small-D
    #    lane-packing path (x viewed as (B, S/4, 128)).
    B, S, D = 2, 8, 32
    x = jax.random.normal(k0, (B, S, D), dtype=jnp.float32)
    pooled, none_out = mean_pool(x)
    pooled = jax.block_until_ready(pooled)
    ref = jnp.mean(x, axis=1)
    assert pooled.shape == (B, D)
    assert none_out is None
    assert jnp.allclose(pooled, ref, atol=1e-5, rtol=1e-5)

    # 2) Exercise the multi-step S reduction (accumulator init / accumulate /
    #    finalize path) with an explicit S-tile smaller than S: grid = (1, 2).
    B2, S2, D2 = 8, 16, 128
    x2 = jax.random.normal(k1, (B2, S2, D2), dtype=jnp.float32)
    pooled2, _ = mean_pool(x2, tb=8, ts=8)
    pooled2 = jax.block_until_ready(pooled2)
    ref2 = jnp.mean(x2, axis=1)
    assert pooled2.shape == (B2, D2)
    assert jnp.allclose(pooled2, ref2, atol=1e-5, rtol=1e-5)

    # 3) bf16 input with lane packing: validates the accumulation-dtype reduce
    #    and the f32 fold of the packed partial means.
    B3, S3, D3 = 4, 32, 64
    x3 = jax.random.normal(k2, (B3, S3, D3), dtype=jnp.float32).astype(jnp.bfloat16)
    pooled3, _ = mean_pool(x3)
    pooled3 = jax.block_until_ready(pooled3)
    ref3 = jnp.mean(x3.astype(jnp.float32), axis=1)
    assert pooled3.shape == (B3, D3)
    assert jnp.allclose(pooled3.astype(jnp.float32), ref3, atol=2e-2, rtol=2e-2)

    print("KERNEL_OK")
</pallas_src>

<mosaic_0001>
module attributes {stable_mosaic.version = 11 : i64} {
  func.func @_mean_pool_single_kernel(%arg0: i32, %arg1: memref<2x2x128xf32, #tpu.memory_space<vmem>>, %arg2: memref<2x128xf32, #tpu.memory_space<vmem>>) attributes {dimension_semantics = [#tpu.dimension_semantics<parallel>], iteration_bounds = array<i64: 1>, scalar_prefetch = 0 : i64, scratch_operands = 0 : i64, tpu.core_type = #tpu.core_type<tc>, window_params = [{transform_indices = @transform_0, window_bounds = array<i64: 2, 2, 128>}, {transform_indices = @transform_1, window_bounds = array<i64: 2, 128>}]} {
    %c0 = arith.constant 0 : index
    %c0_0 = arith.constant 0 : index
    %c0_1 = arith.constant 0 : index
    %0 = vector.load %arg1[%c0, %c0_0, %c0_1] : memref<2x2x128xf32, #tpu.memory_space<vmem>>, vector<2x2x128xf32>
    %cst = arith.constant dense<0.000000e+00> : vector<2x128xf32>
    %1 = vector.multi_reduction <add>, %0, %cst [1] : vector<2x2x128xf32> to vector<2x128xf32>
    %cst_2 = arith.constant 1.250000e-01 : f32
    %2 = vector.broadcast %cst_2 : f32 to vector<2x128xf32>
    %3 = arith.mulf %1, %2 : vector<2x128xf32>
    %c0_3 = arith.constant 0 : index
    %c0_4 = arith.constant 0 : index
    %4 = vector.load %arg2[%c0_3, %c0_4] : memref<2x128xf32, #tpu.memory_space<vmem>>, vector<2x128xf32>
    tpu.vector_store %arg2[%c0_3, %c0_4], %3 {strides = array<i32>} : memref<2x128xf32, #tpu.memory_space<vmem>>, vector<2x128xf32>,
    return
  }
  func.func @transform_0(%arg0: i32) -> (i32, i32, i32) {
    %c0_i32 = arith.constant 0 : i32
    %c0_i32_0 = arith.constant 0 : i32
    %c0_i32_1 = arith.constant 0 : i32
    return %arg0, %c0_i32, %c0_i32_0 : i32, i32, i32
  }
  func.func @transform_1(%arg0: i32) -> (i32, i32) {
    %c0_i32 = arith.constant 0 : i32
    %c0_i32_0 = arith.constant 0 : i32
    return %arg0, %c0_i32 : i32, i32
  }
}

</mosaic_0001>

<llo_original>
// kernel: tpu_custom_call.1
$region0: #{tpu_custom_call.1}
  #allocation0 [shape = 'u32[]', space=smem, size = 0x4, offset = 0x4, fixed_abs, tag = 'smem constant byte address 0x4 - core index']
  #allocation1 [shape = 'u32[144,128]{1,0:T(1,128)}', space=vmem, size = 0x12000, scoped, tag = 'internal scratch']
  %s0 = inlined_call_operand.hbm [shape: f32[2,2,128], index: 0, kind: input, shape index: {}]
  %s1 = inlined_call_operand.hbm [shape: f32[2,128], index: 1, kind: output, shape index: {}]
  %s2 = sld [smem:[#allocation0]]
  $region18: #{tpu_custom_call.1} parent=0
    _
  %s4 = ssub.s32 1, %s2
  %s5 = scalar_select 0, %s4, %s2
  $region1: #{tpu_custom_call.1} parent=0
    #allocation2 [shape = 'u8[2048]{0}', space=vmem, size = 0x800, scoped, tag = 'input window, operand 0, single buffered']
    #allocation3 [shape = 's32[1]{0}', space=sflag, size = 0x4, scoped, tag = 'scoped memory for tpu_custom_call.1']
    #allocation4 [shape = 's32[1]{0}', space=sflag, size = 0x4, scoped, tag = 'scoped memory for tpu_custom_call.1']
    #allocation5 [shape = 'u8[1024]{0}', space=vmem, size = 0x400, scoped, tag = 'output window, operand 0, single buffered']
    %6 = vsyncpa [#allocation3], 0
    %7 = vsyncpa [#allocation4], 0
    // Predicated region
    $region2: #{tpu_custom_call.1} parent=1 // pred_check
      _
    $region3: #{tpu_custom_call.1} parent=1 // pred_check_branch
      %9 = sbr.rel (0) target = $region5
    $region4: #{tpu_custom_call.1} parent=1 // pred_region
      %s11 = ssub.s32 64, 64
      %12 = vsyncadd [#allocation3], %s11
      %s13 = sshll.u32 [#allocation2], 4
      %s14 = int_to_ptr.vmem [resolvable:$true] %s13
      %19 = dma.hbm_to_vmem [thread:$0]  %s0, 64, %s14, [#allocation3], 32, 32, 2
    $region5: #{tpu_custom_call.1} parent=1 // pred_fallthru
      _
    // Predicated region
    $region6: #{tpu_custom_call.1} parent=1 // pred_check
      _
    $region7: #{tpu_custom_call.1} parent=1 // pred_check_branch
      %21 = sbr.rel (0) target = $region9
    $region8: #{tpu_custom_call.1} parent=1 // pred_region
      %22 = dma.done [#allocation3], 64
    $region9: #{tpu_custom_call.1} parent=1 // pred_fallthru
      _
    %v23 = vld [vmem:[#allocation2] sm:$0x3]
    %v24 = vld [vmem:[#allocation2 + $0x2] sm:$0x3]
    %vm25 = vcmask 1041408
    %v26 = vsel %vm25, %v23, 0.0
    %v27 = vrot.slane %v26, 4
    %v28 = vadd.f32 %v26, %v27
    %v29 = vrot.slane %v28, 2
    %v30 = vadd.f32 %v28, %v29
    %v31 = vrot.slane %v30, 1
    %v32 = vadd.f32 %v30, %v31
    %v33 = vsel %vm25, %v24, 0.0
    %v34 = vrot.slane %v33, 4
    %v35 = vadd.f32 %v33, %v34
    %v36 = vrot.slane %v35, 2
    %v37 = vadd.f32 %v35, %v36
    %v38 = vrot.slane %v37, 1
    %v39 = vadd.f32 %v37, %v38
    %v40 = vmul.f32 %v32, 0.125
    %v41 = vmul.f32 %v39, 0.125
    %vm44 = vcmask 1041409
    %v45 = vsel %vm44, %v41, %v40
    %47 = vst [vmem:[#allocation5] sm:$0x3] %v45
    // Predicated region
    $region10: #{tpu_custom_call.1} parent=1 // pred_check
      _
    $region11: #{tpu_custom_call.1} parent=1 // pred_check_branch
      %49 = sbr.rel (0) target = $region13
    $region12: #{tpu_custom_call.1} parent=1 // pred_region
      %s51 = ssub.s32 32, 32
      %52 = vsyncadd [#allocation4], %s51
      %s54 = sshll.u32 [#allocation5], 4
      %s55 = int_to_ptr.vmem [resolvable:$true] %s54
      %57 = dma.vmem_to_hbm [thread:$0]  %s55, 32, %s1, [#allocation4]
    $region13: #{tpu_custom_call.1} parent=1 // pred_fallthru
      _
    // Predicated region
    $region14: #{tpu_custom_call.1} parent=1 // pred_check
      _
    $region15: #{tpu_custom_call.1} parent=1 // pred_check_branch
      %59 = sbr.rel (0) target = $region17
    $region16: #{tpu_custom_call.1} parent=1 // pred_region
      %60 = dma.done [#allocation4], 32
    $region17: #{tpu_custom_call.1} parent=1 // pred_fallthru
      _
    %61 = vsyncpa [#allocation3], 1
    %62 = vsyncpa [#allocation4], 1

</llo_original>
